<compile_context>
chip_gen: v6e
topology: v6e:2x2x1
jax: 0.10.0
libtpu: 0.0.40
codegen_flags: <defaults>
</compile_context>

<pallas_src>
import functools
import math

import jax
import jax.numpy as jnp
from jax import lax
from jax.experimental import pallas as pl
from jax.experimental.pallas import tpu as pltpu


_SQRT_2_OVER_PI = math.sqrt(2.0 / math.pi)


def _gelu_new(x):
    # GPT-J uses activation_function == "gelu_new" (tanh approximation).
    return 0.5 * x * (1.0 + jnp.tanh(_SQRT_2_OVER_PI * (x + 0.044715 * x * x * x)))


def gptj_mlp_kernel(x_ref, w1_ref, b1_ref, w2_ref, b2_ref, o_ref, acc_ref, *,
                    num_chunks, chunk):
    # x_ref:  (tm, H)   token tile (resident across the j axis)
    # w1_ref: (H,  ti)  fc_in weight block      b1_ref: (1, ti)
    # w2_ref: (ti, H)   fc_out weight block     b2_ref: (1, H)
    # o_ref:  (tm, H)   output tile             acc_ref: (tm, H) f32 scratch
    j = pl.program_id(1)

    @pl.when(j == 0)
    def _init():
        # Fold the fc_out bias into the accumulator init: removes a full
        # (tm, H) VPU add from the final step's critical path.
        acc_ref[...] = jnp.broadcast_to(
            b2_ref[...].astype(jnp.float32), acc_ref.shape)

    x = x_ref[...]

    def chunk_body(c, carry):
        # Sub-tile the I-block so the gelu of one chunk overlaps the MXU work
        # of adjacent chunks instead of stalling the MXU for a full (tm, ti)
        # VPU/EUP pass.
        off = pl.multiple_of(c * chunk, chunk)
        h = jnp.dot(x, w1_ref[:, pl.ds(off, chunk)],
                    preferred_element_type=jnp.float32)
        h = h + b1_ref[:, pl.ds(off, chunk)]
        h = _gelu_new(h)
        # Cast to the fc_out weight dtype so bf16 weights keep the MXU on its
        # native bf16 path; f32 accumulation preserved via preferred_element_type.
        acc_ref[...] += jnp.dot(h.astype(w2_ref.dtype),
                                w2_ref[pl.ds(off, chunk), :],
                                preferred_element_type=jnp.float32)
        return carry

    if num_chunks == 1:
        chunk_body(0, 0)
    else:
        lax.fori_loop(0, num_chunks, chunk_body, 0, unroll=True)

    @pl.when(j == pl.num_programs(1) - 1)
    def _finalize():
        # Dropout (resid_pdrop) is the eval-mode identity.
        o_ref[...] = acc_ref[...].astype(o_ref.dtype)


def _round_up(x, m):
    return ((x + m - 1) // m) * m


def _pick_chunk(total, preferred, granule):
    """Largest multiple of `granule` <= preferred that divides `total`;
    falls back to the full extent."""
    if total <= preferred:
        return total
    c = (preferred // granule) * granule
    while c >= granule:
        if total % c == 0:
            return c
        c -= granule
    return total


def _chip_params():
    """Per-generation (tm_pref, ti_pref, ti_granule, vmem_capacity_bytes)."""
    cap = None
    try:
        cap = int(pltpu.get_tpu_info().vmem_capacity_bytes)
    except Exception:
        cap = None
    kind = ""
    try:
        kind = jax.devices()[0].device_kind.lower()
    except Exception:
        pass

    if "v7" in kind:
        # 64 MiB VMEM / TC; ~996 TF/s vs ~3.2 TB/s -> tm ~ 384-512 is enough.
        tm, ti, gran, default_cap = 512, 1024, 256, 64 << 20
    elif "v6" in kind:
        # 918 TF/s vs ~1.35 TB/s -> needs tm ~ 768-1024 to be MXU-bound.
        tm, ti, gran, default_cap = 1024, 1024, 256, 128 << 20
    elif "v5" in kind and ("lite" in kind or "v5e" in kind):
        # 197 TF/s vs ~0.82 TB/s -> tm ~ 256 already MXU-bound; 128-wide MXU.
        tm, ti, gran, default_cap = 256, 512, 128, 128 << 20
    elif "v5" in kind:
        tm, ti, gran, default_cap = 512, 1024, 128, 128 << 20
    else:
        # Conservative defaults (also safe on a hypothetical 64 MiB chip).
        tm, ti, gran, default_cap = 512, 512, 128, 64 << 20

    if cap is None:
        cap = default_cap
    return tm, ti, gran, cap


def _pick_token_tile(S, tm_pref):
    """Token tile: multiple of 8, <= tm_pref, chosen so the parallel grid axis
    has >= 2 (and preferably an even number of) tiles when S allows it, so both
    v7x TensorCores / the v6e megacore get balanced work."""
    tm_pref = max(8, min(int(tm_pref), _round_up(S, 8)))
    n = -(-S // tm_pref)
    if n == 1 and S > 8:
        n = 2
    if n > 1 and n % 2 == 1:
        n += 1
    return max(8, _round_up(-(-S // n), 8))


def _vmem_estimate(tm, ti, H, x_item, w_item, o_item):
    # Double-buffered pipelined inputs/output + f32 accumulator + the
    # Mosaic-materialized gelu intermediates (pre-gelu f32, gelu temp, cast copy)
    # for one sub-tile chunk.
    tc = min(256, ti)
    dbl = 2 * (tm * H * x_item        # x tile
               + H * ti * w_item      # W1 block
               + ti * w_item          # b1 block
               + ti * H * w_item      # W2 block
               + H * w_item           # b2
               + tm * H * o_item)     # output tile
    acc = tm * H * 4
    interm = tm * tc * (4 + 4 + w_item)
    return dbl + acc + interm


def gptj_mlp(hidden_states, w_fc_in, b_fc_in, w_fc_out, b_fc_out, *,
             tm=None, ti=None):
    S, H = hidden_states.shape
    Hi, I = w_fc_in.shape
    assert Hi == H and w_fc_out.shape == (I, H)
    assert b_fc_in.shape == (I,) and b_fc_out.shape == (H,)

    out_dtype = hidden_states.dtype

    tm_pref, ti_pref, granule, vmem_cap = _chip_params()
    if tm is not None:
        tm_pref = tm
    if ti is not None:
        ti_pref = ti
    if I % granule != 0:
        granule = 128

    # Intermediate (reduction) block: multiple of `granule` dividing I.
    ti_eff = _pick_chunk(I, ti_pref, granule)
    # Token tile (parallelism-aware).
    tm_eff = _pick_token_tile(S, tm_pref)

    # Shrink tiles (ti first, then tm) until the estimate fits the per-chip
    # VMEM budget (physical capacity minus headroom).
    w_item = jnp.dtype(w_fc_in.dtype).itemsize
    x_item = jnp.dtype(hidden_states.dtype).itemsize
    o_item = jnp.dtype(out_dtype).itemsize
    budget = vmem_cap - (8 << 20)
    while _vmem_estimate(tm_eff, ti_eff, H, x_item, w_item, o_item) > budget:
        shrunk = False
        if ti_eff > max(512, 2 * granule):
            new_ti = _pick_chunk(I, ti_eff // 2, granule)
            if new_ti < ti_eff:
                ti_eff = new_ti
                shrunk = True
        if not shrunk and tm_eff > 64:
            tm_eff = max(64, _round_up(max(tm_eff // 2, 64), 8))
            shrunk = True
        if not shrunk:
            break

    # Pad the token axis to a multiple of the token tile.
    Sp = _round_up(S, tm_eff)
    if Sp != S:
        hidden_states = jnp.pad(hidden_states, ((0, Sp - S), (0, 0)))

    # In-kernel sub-tile (chunk) of the I-block.
    if ti_eff % 256 == 0 and ti_eff > 256:
        tc = 256
    elif ti_eff % 128 == 0 and ti_eff > 128:
        tc = 128
    else:
        tc = ti_eff
    num_chunks = ti_eff // tc

    b1 = b_fc_in.reshape(1, I)
    b2 = b_fc_out.reshape(1, H)

    grid = (Sp // tm_eff, I // ti_eff)

    vmem_est = _vmem_estimate(tm_eff, ti_eff, H, x_item, w_item, o_item)
    vmem_limit = int(min(max(vmem_est + (4 << 20), 32 << 20),
                         vmem_cap - (4 << 20)))

    # TODO(synk): for tiny-S / decode shapes profiled as DMA-gap-bound, try
    # pipeline_mode=pl.Buffered(3) on the W1/W2 specs.
    grid_spec = pltpu.PrefetchScalarGridSpec(
        num_scalar_prefetch=0,
        grid=grid,
        in_specs=[
            pl.BlockSpec((tm_eff, H), lambda i, j: (i, 0)),   # token tile
            pl.BlockSpec((H, ti_eff), lambda i, j: (0, j)),   # fc_in weight block
            pl.BlockSpec((1, ti_eff), lambda i, j: (0, j)),   # fc_in bias block
            pl.BlockSpec((ti_eff, H), lambda i, j: (j, 0)),   # fc_out weight block
            pl.BlockSpec((1, H), lambda i, j: (0, 0)),        # fc_out bias
        ],
        out_specs=pl.BlockSpec((tm_eff, H), lambda i, j: (i, 0)),
        scratch_shapes=[pltpu.VMEM((tm_eff, H), jnp.float32)],
    )

    out = pl.pallas_call(
        functools.partial(gptj_mlp_kernel, num_chunks=num_chunks, chunk=tc),
        out_shape=jax.ShapeDtypeStruct((Sp, H), out_dtype),
        grid_spec=grid_spec,
        compiler_params=pltpu.CompilerParams(
            dimension_semantics=("parallel", "arbitrary"),
            vmem_limit_bytes=vmem_limit,
        ),
    )(hidden_states, w_fc_in, b1, w_fc_out, b2)

    if Sp != S:
        out = out[:S]
    return out


def gptj_mlp_ref(x, w1, b1, w2, b2):
    h = x @ w1 + b1[None, :]
    h = _gelu_new(h)
    return h @ w2 + b2[None, :]


if __name__ == "__main__":
    # Small shapes consistent with the module: seq=32, hidden=128,
    # intermediate = 4*hidden = 512 (GPT-J default n_inner = 4*n_embd).
    # H=128 keeps output stores lane-dense even at this toy size.
    S, H = 32, 128
    I = 4 * H

    key = jax.random.PRNGKey(0)
    kx, k1, kb1, k2, kb2 = jax.random.split(key, 5)

    x = jax.random.normal(kx, (S, H), dtype=jnp.float32)
    w_fc_in = jax.random.normal(k1, (H, I), dtype=jnp.float32) * 0.02
    b_fc_in = jax.random.normal(kb1, (I,), dtype=jnp.float32) * 0.02
    w_fc_out = jax.random.normal(k2, (I, H), dtype=jnp.float32) * 0.02
    b_fc_out = jax.random.normal(kb2, (H,), dtype=jnp.float32) * 0.02

    # Small explicit tiles so the test exercises multiple grid steps on both
    # grid axes AND the in-kernel sub-tile loop (ti=256 -> 2 chunks of 128).
    out = gptj_mlp(x, w_fc_in, b_fc_in, w_fc_out, b_fc_out, tm=16, ti=256)
    out = jax.block_until_ready(out)

    ref = gptj_mlp_ref(x, w_fc_in, b_fc_in, w_fc_out, b_fc_out)
    assert out.shape == (S, H)
    assert jnp.allclose(out, ref, atol=2e-4, rtol=2e-4), "mismatch vs reference"

    print("KERNEL_OK")
</pallas_src>

<mosaic_0001>
module attributes {stable_mosaic.version = 11 : i64} {
  func.func @gptj_mlp_kernel(%arg0: i32, %arg1: i32, %arg2: memref<16x128xf32, #tpu.memory_space<vmem>>, %arg3: memref<128x256xf32, #tpu.memory_space<vmem>>, %arg4: memref<1x256xf32, #tpu.memory_space<vmem>>, %arg5: memref<256x128xf32, #tpu.memory_space<vmem>>, %arg6: memref<1x128xf32, #tpu.memory_space<vmem>>, %arg7: memref<16x128xf32, #tpu.memory_space<vmem>>, %arg8: memref<16x128xf32, #tpu.memory_space<vmem>>) attributes {dimension_semantics = [#tpu.dimension_semantics<parallel>, #tpu.dimension_semantics<arbitrary>], iteration_bounds = array<i64: 2, 2>, scalar_prefetch = 0 : i64, scratch_operands = 1 : i64, tpu.core_type = #tpu.core_type<tc>, window_params = [{transform_indices = @transform_0, window_bounds = array<i64: 16, 128>}, {transform_indices = @transform_1, window_bounds = array<i64: 128, 256>}, {transform_indices = @transform_2, window_bounds = array<i64: 1, 256>}, {transform_indices = @transform_3, window_bounds = array<i64: 256, 128>}, {pipeline_mode = #tpu.pipeline_mode<synchronous>, transform_indices = @transform_4, window_bounds = array<i64: 1, 128>}, {transform_indices = @transform_5, window_bounds = array<i64: 16, 128>}]} {
    %c0_i32 = arith.constant 0 : i32
    %0 = arith.cmpi eq, %arg1, %c0_i32 : i32
    %1 = arith.extui %0 : i1 to i32
    %c0_i32_0 = arith.constant 0 : i32
    %2 = arith.cmpi ne, %1, %c0_i32_0 : i32
    scf.if %2 {
      %c0_31 = arith.constant 0 : index
      %c0_32 = arith.constant 0 : index
      %63 = vector.load %arg6[%c0_31, %c0_32] : memref<1x128xf32, #tpu.memory_space<vmem>>, vector<1x128xf32>
      %64 = vector.shape_cast %63 : vector<1x128xf32> to vector<1x128xf32>
      %65 = vector.broadcast %64 : vector<1x128xf32> to vector<16x128xf32>
      %c0_33 = arith.constant 0 : index
      %c0_34 = arith.constant 0 : index
      %66 = vector.load %arg8[%c0_33, %c0_34] : memref<16x128xf32, #tpu.memory_space<vmem>>, vector<16x128xf32>
      tpu.vector_store %arg8[%c0_33, %c0_34], %65 {strides = array<i32>} : memref<16x128xf32, #tpu.memory_space<vmem>>, vector<16x128xf32>,
    } else {
    }
    %c0 = arith.constant 0 : index
    %c0_1 = arith.constant 0 : index
    %3 = vector.load %arg2[%c0, %c0_1] : memref<16x128xf32, #tpu.memory_space<vmem>>, vector<16x128xf32>
    %c0_i32_2 = arith.constant 0 : i32
    %c128_i32 = arith.constant 128 : i32
    %4 = arith.muli %c0_i32_2, %c128_i32 : i32
    %5 = tpu.assume_multiple %4, 128 : i32
    %c0_3 = arith.constant 0 : index
    %6 = arith.index_cast %5 : i32 to index
    %7 = vector.load %arg3[%c0_3, %6] : memref<128x256xf32, #tpu.memory_space<vmem>>, vector<128x128xf32>
    %cst = arith.constant dense<0.000000e+00> : vector<16x128xf32>
    %8 = tpu.matmul %3, %7, %cst {dimension_numbers = #tpu.dot_dimension_numbers<[1], [0], [0], [1], [0, 0, 1, 1], [], []>} : vector<16x128xf32>, vector<128x128xf32>, vector<16x128xf32> -> vector<16x128xf32>
    %c0_4 = arith.constant 0 : index
    %9 = arith.index_cast %5 : i32 to index
    %10 = vector.load %arg4[%c0_4, %9] : memref<1x256xf32, #tpu.memory_space<vmem>>, vector<1x128xf32>
    %11 = vector.broadcast %10 : vector<1x128xf32> to vector<16x128xf32>
    %12 = arith.addf %8, %11 : vector<16x128xf32>
    %cst_5 = arith.constant 5.000000e-01 : f32
    %13 = vector.broadcast %cst_5 : f32 to vector<16x128xf32>
    %14 = arith.mulf %13, %12 : vector<16x128xf32>
    %cst_6 = arith.constant 4.471500e-02 : f32
    %15 = vector.broadcast %cst_6 : f32 to vector<16x128xf32>
    %16 = arith.mulf %15, %12 : vector<16x128xf32>
    %17 = arith.mulf %16, %12 : vector<16x128xf32>
    %18 = arith.mulf %17, %12 : vector<16x128xf32>
    %19 = arith.addf %12, %18 : vector<16x128xf32>
    %cst_7 = arith.constant 0.797884583 : f32
    %20 = vector.broadcast %cst_7 : f32 to vector<16x128xf32>
    %21 = arith.mulf %20, %19 : vector<16x128xf32>
    %22 = math.tanh %21 : vector<16x128xf32>
    %cst_8 = arith.constant 1.000000e+00 : f32
    %23 = vector.broadcast %cst_8 : f32 to vector<16x128xf32>
    %24 = arith.addf %23, %22 : vector<16x128xf32>
    %25 = arith.mulf %14, %24 : vector<16x128xf32>
    %c0_9 = arith.constant 0 : index
    %c0_10 = arith.constant 0 : index
    %26 = vector.load %arg8[%c0_9, %c0_10] : memref<16x128xf32, #tpu.memory_space<vmem>>, vector<16x128xf32>
    %27 = arith.index_cast %5 : i32 to index
    %c0_11 = arith.constant 0 : index
    %28 = vector.load %arg5[%27, %c0_11] : memref<256x128xf32, #tpu.memory_space<vmem>>, vector<128x128xf32>
    %cst_12 = arith.constant dense<0.000000e+00> : vector<16x128xf32>
    %29 = tpu.matmul %25, %28, %cst_12 {dimension_numbers = #tpu.dot_dimension_numbers<[1], [0], [0], [1], [0, 0, 1, 1], [], []>} : vector<16x128xf32>, vector<128x128xf32>, vector<16x128xf32> -> vector<16x128xf32>
    %30 = arith.addf %26, %29 : vector<16x128xf32>
    %c0_13 = arith.constant 0 : index
    %c0_14 = arith.constant 0 : index
    %31 = vector.load %arg8[%c0_13, %c0_14] : memref<16x128xf32, #tpu.memory_space<vmem>>, vector<16x128xf32>
    tpu.vector_store %arg8[%c0_13, %c0_14], %30 {strides = array<i32>} : memref<16x128xf32, #tpu.memory_space<vmem>>, vector<16x128xf32>,
    %c1_i32 = arith.constant 1 : i32
    %c128_i32_15 = arith.constant 128 : i32
    %32 = arith.muli %c1_i32, %c128_i32_15 : i32
    %33 = tpu.assume_multiple %32, 128 : i32
    %c0_16 = arith.constant 0 : index
    %34 = arith.index_cast %33 : i32 to index
    %35 = vector.load %arg3[%c0_16, %34] : memref<128x256xf32, #tpu.memory_space<vmem>>, vector<128x128xf32>
    %cst_17 = arith.constant dense<0.000000e+00> : vector<16x128xf32>
    %36 = tpu.matmul %3, %35, %cst_17 {dimension_numbers = #tpu.dot_dimension_numbers<[1], [0], [0], [1], [0, 0, 1, 1], [], []>} : vector<16x128xf32>, vector<128x128xf32>, vector<16x128xf32> -> vector<16x128xf32>
    %c0_18 = arith.constant 0 : index
    %37 = arith.index_cast %33 : i32 to index
    %38 = vector.load %arg4[%c0_18, %37] : memref<1x256xf32, #tpu.memory_space<vmem>>, vector<1x128xf32>
    %39 = vector.broadcast %38 : vector<1x128xf32> to vector<16x128xf32>
    %40 = arith.addf %36, %39 : vector<16x128xf32>
    %cst_19 = arith.constant 5.000000e-01 : f32
    %41 = vector.broadcast %cst_19 : f32 to vector<16x128xf32>
    %42 = arith.mulf %41, %40 : vector<16x128xf32>
    %cst_20 = arith.constant 4.471500e-02 : f32
    %43 = vector.broadcast %cst_20 : f32 to vector<16x128xf32>
    %44 = arith.mulf %43, %40 : vector<16x128xf32>
    %45 = arith.mulf %44, %40 : vector<16x128xf32>
    %46 = arith.mulf %45, %40 : vector<16x128xf32>
    %47 = arith.addf %40, %46 : vector<16x128xf32>
    %cst_21 = arith.constant 0.797884583 : f32
    %48 = vector.broadcast %cst_21 : f32 to vector<16x128xf32>
    %49 = arith.mulf %48, %47 : vector<16x128xf32>
    %50 = math.tanh %49 : vector<16x128xf32>
    %cst_22 = arith.constant 1.000000e+00 : f32
    %51 = vector.broadcast %cst_22 : f32 to vector<16x128xf32>
    %52 = arith.addf %51, %50 : vector<16x128xf32>
    %53 = arith.mulf %42, %52 : vector<16x128xf32>
    %c0_23 = arith.constant 0 : index
    %c0_24 = arith.constant 0 : index
    %54 = vector.load %arg8[%c0_23, %c0_24] : memref<16x128xf32, #tpu.memory_space<vmem>>, vector<16x128xf32>
    %55 = arith.index_cast %33 : i32 to index
    %c0_25 = arith.constant 0 : index
    %56 = vector.load %arg5[%55, %c0_25] : memref<256x128xf32, #tpu.memory_space<vmem>>, vector<128x128xf32>
    %cst_26 = arith.constant dense<0.000000e+00> : vector<16x128xf32>
    %57 = tpu.matmul %53, %56, %cst_26 {dimension_numbers = #tpu.dot_dimension_numbers<[1], [0], [0], [1], [0, 0, 1, 1], [], []>} : vector<16x128xf32>, vector<128x128xf32>, vector<16x128xf32> -> vector<16x128xf32>
    %58 = arith.addf %54, %57 : vector<16x128xf32>
    %c0_27 = arith.constant 0 : index
    %c0_28 = arith.constant 0 : index
    %59 = vector.load %arg8[%c0_27, %c0_28] : memref<16x128xf32, #tpu.memory_space<vmem>>, vector<16x128xf32>
    tpu.vector_store %arg8[%c0_27, %c0_28], %58 {strides = array<i32>} : memref<16x128xf32, #tpu.memory_space<vmem>>, vector<16x128xf32>,
    %c2_i32 = arith.constant 2 : i32
    %c1_i32_29 = arith.constant 1 : i32
    %60 = arith.cmpi eq, %arg1, %c1_i32_29 : i32
    %61 = arith.extui %60 : i1 to i32
    %c0_i32_30 = arith.constant 0 : i32
    %62 = arith.cmpi ne, %61, %c0_i32_30 : i32
    scf.if %62 {
      %c0_31 = arith.constant 0 : index
      %c0_32 = arith.constant 0 : index
      %63 = vector.load %arg8[%c0_31, %c0_32] : memref<16x128xf32, #tpu.memory_space<vmem>>, vector<16x128xf32>
      %c0_33 = arith.constant 0 : index
      %c0_34 = arith.constant 0 : index
      %64 = vector.load %arg7[%c0_33, %c0_34] : memref<16x128xf32, #tpu.memory_space<vmem>>, vector<16x128xf32>
      tpu.vector_store %arg7[%c0_33, %c0_34], %63 {strides = array<i32>} : memref<16x128xf32, #tpu.memory_space<vmem>>, vector<16x128xf32>,
    } else {
    }
    return
  }
  func.func @transform_0(%arg0: i32, %arg1: i32) -> (i32, i32) {
    %c0_i32 = arith.constant 0 : i32
    %c0_i32_0 = arith.constant 0 : i32
    return %arg0, %c0_i32 : i32, i32
  }
  func.func @transform_1(%arg0: i32, %arg1: i32) -> (i32, i32) {
    %c0_i32 = arith.constant 0 : i32
    %c0_i32_0 = arith.constant 0 : i32
    return %c0_i32, %arg1 : i32, i32
  }
  func.func @transform_2(%arg0: i32, %arg1: i32) -> (i32, i32) {
    %c0_i32 = arith.constant 0 : i32
    %c0_i32_0 = arith.constant 0 : i32
    return %c0_i32, %arg1 : i32, i32
  }
  func.func @transform_3(%arg0: i32, %arg1: i32) -> (i32, i32) {
    %c0_i32 = arith.constant 0 : i32
    %c0_i32_0 = arith.constant 0 : i32
    return %arg1, %c0_i32 : i32, i32
  }
  func.func @transform_4(%arg0: i32, %arg1: i32) -> (i32, i32) {
    %c0_i32 = arith.constant 0 : i32
    %c0_i32_0 = arith.constant 0 : i32
    %c0_i32_1 = arith.constant 0 : i32
    return %c0_i32, %c0_i32_0 : i32, i32
  }
  func.func @transform_5(%arg0: i32, %arg1: i32) -> (i32, i32) {
    %c0_i32 = arith.constant 0 : i32
    %c0_i32_0 = arith.constant 0 : i32
    return %arg0, %c0_i32 : i32, i32
  }
}

</mosaic_0001>

<llo_original>
// kernel: tpu_custom_call.1
$region0: #{tpu_custom_call.1}
  #allocation0 [shape = 'u32[]', space=smem, size = 0x4, offset = 0x4, fixed_abs, tag = 'smem constant byte address 0x4 - core index']
  #allocation1 [shape = 'u32[144,128]{1,0:T(1,128)}', space=vmem, size = 0x12000, scoped, tag = 'internal scratch']
  #allocation2 [shape = 'f32[16,128]{1,0:T(8,128)}', space=vmem, size = 0x2000, scoped, tag = 'scratch operand']
  %s0 = inlined_call_operand.hbm [shape: f32[32,128], index: 0, kind: input, shape index: {}]
  %s1 = inlined_call_operand.hbm [shape: f32[128,512], index: 1, kind: input, shape index: {}]
  %s2 = inlined_call_operand.hbm [shape: f32[1,512], index: 2, kind: input, shape index: {}]
  %s3 = inlined_call_operand.hbm [shape: f32[512,128], index: 3, kind: input, shape index: {}]
  %s4 = inlined_call_operand.vmem [shape: f32[1,128], index: 4, kind: input, shape index: {}]
  %s5 = inlined_call_operand.hbm [shape: f32[32,128], index: 5, kind: output, shape index: {}]
  %s6 = sld [smem:[#allocation0]]
  $region77: #{tpu_custom_call.1} parent=0
    _
  %s8 = ssub.s32 1, %s6
  %s9 = scalar_select 0, %s8, %s6
  $region1: #{tpu_custom_call.1} parent=0
    #allocation3 [shape = 'u8[16384]{0}', space=vmem, size = 0x4000, scoped, tag = 'input window, operand 0']
    #allocation4 [shape = 's32[2]{0}', space=sflag, size = 0x8, scoped, tag = 'scoped memory for tpu_custom_call.1']
    #allocation5 [shape = 's32[2]{0}', space=sflag, size = 0x8, scoped, tag = 'scoped memory for tpu_custom_call.1']
    #allocation6 [shape = 'u8[262144]{0}', space=vmem, size = 0x40000, scoped, tag = 'input window, operand 1']
    #allocation7 [shape = 's32[2]{0}', space=sflag, size = 0x8, scoped, tag = 'scoped memory for tpu_custom_call.1']
    #allocation8 [shape = 'u8[2048]{0}', space=vmem, size = 0x800, scoped, tag = 'input window, operand 2']
    #allocation9 [shape = 'u8[262144]{0}', space=vmem, size = 0x40000, scoped, tag = 'input window, operand 3']
    #allocation10 [shape = 's32[2]{0}', space=sflag, size = 0x8, scoped, tag = 'scoped memory for tpu_custom_call.1']
    #allocation11 [shape = 'u8[16384]{0}', space=vmem, size = 0x4000, scoped, tag = 'output window, operand 0']
    %10 = vsyncpa [#allocation4], 0
    %s11 = scalar_lea.sflag [#allocation4], 1
    %12 = vsyncpa %s11, 0
    %13 = vsyncpa [#allocation7], 0
    %s14 = scalar_lea.sflag [#allocation7], 1
    %15 = vsyncpa %s14, 0
    %16 = vsyncpa [#allocation10], 0
    %s17 = scalar_lea.sflag [#allocation10], 1
    %18 = vsyncpa %s17, 0
    %19 = vsyncpa [#allocation5], 0
    %s20 = scalar_lea.sflag [#allocation5], 1
    %21 = vsyncpa %s20, 0
    loop: start=0, step=1, limit=6
    $region2: #{tpu_custom_call.1} parent=1 // loop_pre_header
      _
    $region3: #{tpu_custom_call.1} parent=1 // loop_header
      %s23 = sphi 0, %s27
      %p24 = scmp.ge.s32.totalorder %s23, 6
      %s30 = sphi 0, %s42
      %s31 = sphi 0, %s38
      %s32 = sphi 0, %s30
      %s33 = sphi 0, %s31
      %s34 = sphi 0, %s32
      %s35 = sphi 0, %s33
      %s45 = sphi 0, %s47
      %s48 = sphi 0, %s45
      %s49 = sphi 0, %s48
      %s65 = sphi 0, %s49
      %s71 = sphi 0, %s73
      %s74 = sphi 0, %s71
      %s75 = sphi 0, %s74
      %s91 = sphi 0, %s75
      %s97 = sphi 0, %s99
      %s100 = sphi 0, %s97
      %s101 = sphi 0, %s100
      %s117 = sphi 0, %s101
      %s123 = sphi 0, %s125
      %s126 = sphi 0, %s123
      %s127 = sphi 0, %s126
      %s143 = sphi 0, %s127
      %s147 = sphi 0, %s147
      %s149 = sphi 0, %s147
      %s150 = sphi 0, %s149
      %s164 = sphi 0, %s150
      %s170 = sphi 0, %s172
      %s173 = sphi 0, %s170
      %s174 = sphi 0, %s173
      %s190 = sphi 0, %s174
    $region4: #{tpu_custom_call.1} parent=1 // loop_header_branch
      %26 = sbr.rel (%p24) target = $region8
    $region5: #{tpu_custom_call.1} parent=1 // loop_body
      %s28 = ssub.s32 %s23, 1
      %s29 = ssub.s32 %s23, 2
      %s36 = sadd.s32 1, %s31
      %p37 = scmp.ge.s32.totalorder %s36, 2
      %s38 = scalar_select %p37, 0, %s36
      %s39 = sadd.s32 1, %s30
      %s40 = scalar_select %p37, %s39, %s30
      %p41 = scmp.ge.s32.totalorder %s40, 2
      %s42 = scalar_select %p41, 0, %s40
      %s43 = ssub.s32 %s30, %s42
      %p44 = scmp.eq.s32.totalorder %s43, 0
      %s46 = sadd.s32 %s45, 1
      %s47 = scalar_select %p44, %s45, %s46
      %p50 = pneg %p44
      %p51 = scmp.eq.s32.totalorder %s23, 3
      %p52 = por %p50, %p51
      %p53 = scmp.ne.s32.totalorder %s45, %s48
      %p54 = scmp.eq.s32.totalorder %s23, 0
      %p55 = por %p53, %p54
      %p56 = scmp.ne.s32.totalorder %s45, %s48
      %p57 = scmp.eq.s32.totalorder %s28, 3
      %p58 = por %p56, %p57
      %p59 = scmp.ne.s32.totalorder %s48, %s49
      %p60 = scmp.eq.s32.totalorder %s28, 0
      %p61 = por %p59, %p60
      %p62 = scmp.ne.s32.totalorder %s48, %s49
      %p63 = scmp.eq.s32.totalorder %s29, 3
      %p64 = por %p62, %p63
      %p66 = scmp.ne.s32.totalorder %s49, %s65
      %p67 = scmp.eq.s32.totalorder %s29, 0
      %p68 = por %p66, %p67
      %s69 = ssub.s32 %s31, %s38
      %p70 = scmp.eq.s32.totalorder %s69, 0
      %s72 = sadd.s32 %s71, 1
      %s73 = scalar_select %p70, %s71, %s72
      %p76 = pneg %p70
      %p77 = scmp.eq.s32.totalorder %s23, 3
      %p78 = por %p76, %p77
      %p79 = scmp.ne.s32.totalorder %s71, %s74
      %p80 = scmp.eq.s32.totalorder %s23, 0
      %p81 = por %p79, %p80
      %p82 = scmp.ne.s32.totalorder %s71, %s74
      %p83 = scmp.eq.s32.totalorder %s28, 3
      %p84 = por %p82, %p83
      %p85 = scmp.ne.s32.totalorder %s74, %s75
      %p86 = scmp.eq.s32.totalorder %s28, 0
      %p87 = por %p85, %p86
      %p88 = scmp.ne.s32.totalorder %s74, %s75
      %p89 = scmp.eq.s32.totalorder %s29, 3
      %p90 = por %p88, %p89
      %p92 = scmp.ne.s32.totalorder %s75, %s91
      %p93 = scmp.eq.s32.totalorder %s29, 0
      %p94 = por %p92, %p93
      %s95 = ssub.s32 %s31, %s38
      %p96 = scmp.eq.s32.totalorder %s95, 0
      %s98 = sadd.s32 %s97, 1
      %s99 = scalar_select %p96, %s97, %s98
      %p102 = pneg %p96
      %p103 = scmp.eq.s32.totalorder %s23, 3
      %p104 = por %p102, %p103
      %p105 = scmp.ne.s32.totalorder %s97, %s100
      %p106 = scmp.eq.s32.totalorder %s23, 0
      %p107 = por %p105, %p106
      %p108 = scmp.ne.s32.totalorder %s97, %s100
      %p109 = scmp.eq.s32.totalorder %s28, 3
      %p110 = por %p108, %p109
      %p111 = scmp.ne.s32.totalorder %s100, %s101
      %p112 = scmp.eq.s32.totalorder %s28, 0
      %p113 = por %p111, %p112
      %p114 = scmp.ne.s32.totalorder %s100, %s101
      %p115 = scmp.eq.s32.totalorder %s29, 3
      %p116 = por %p114, %p115
      %p118 = scmp.ne.s32.totalorder %s101, %s117
      %p119 = scmp.eq.s32.totalorder %s29, 0
      %p120 = por %p118, %p119
      %s121 = ssub.s32 %s31, %s38
      %p122 = scmp.eq.s32.totalorder %s121, 0
      %s124 = sadd.s32 %s123, 1
      %s125 = scalar_select %p122, %s123, %s124
      %p128 = pneg %p122
      %p129 = scmp.eq.s32.totalorder %s23, 3
      %p130 = por %p128, %p129
      %p131 = scmp.ne.s32.totalorder %s123, %s126
      %p132 = scmp.eq.s32.totalorder %s23, 0
      %p133 = por %p131, %p132
      %p134 = scmp.ne.s32.totalorder %s123, %s126
      %p135 = scmp.eq.s32.totalorder %s28, 3
      %p136 = por %p134, %p135
      %p137 = scmp.ne.s32.totalorder %s126, %s127
      %p138 = scmp.eq.s32.totalorder %s28, 0
      %p139 = por %p137, %p138
      %p140 = scmp.ne.s32.totalorder %s126, %s127
      %p141 = scmp.eq.s32.totalorder %s29, 3
      %p142 = por %p140, %p141
      %p144 = scmp.ne.s32.totalorder %s127, %s143
      %p145 = scmp.eq.s32.totalorder %s29, 0
      %p146 = por %p144, %p145
      %s148 = sadd.s32 %s147, 1
      %p151 = scmp.eq.s32.totalorder %s23, 3
      %p152 = scmp.ne.s32.totalorder %s147, %s149
      %p153 = scmp.eq.s32.totalorder %s23, 0
      %p154 = por %p152, %p153
      %p155 = scmp.ne.s32.totalorder %s147, %s149
      %p156 = scmp.eq.s32.totalorder %s28, 3
      %p157 = por %p155, %p156
      %p158 = scmp.ne.s32.totalorder %s149, %s150
      %p159 = scmp.eq.s32.totalorder %s28, 0
      %p160 = por %p158, %p159
      %p161 = scmp.ne.s32.totalorder %s149, %s150
      %p162 = scmp.eq.s32.totalorder %s29, 3
      %p163 = por %p161, %p162
      %p165 = scmp.ne.s32.totalorder %s150, %s164
      %p166 = scmp.eq.s32.totalorder %s29, 0
      %p167 = por %p165, %p166
      %s168 = ssub.s32 %s30, %s42
      %p169 = scmp.eq.s32.totalorder %s168, 0
      %s171 = sadd.s32 %s170, 1
      %s172 = scalar_select %p169, %s170, %s171
      %p175 = pneg %p169
      %p176 = scmp.eq.s32.totalorder %s23, 3
      %p177 = por %p175, %p176
      %p178 = scmp.ne.s32.totalorder %s170, %s173
      %p179 = scmp.eq.s32.totalorder %s23, 0
      %p180 = por %p178, %p179
      %p181 = scmp.ne.s32.totalorder %s170, %s173
      %p182 = scmp.eq.s32.totalorder %s28, 3
      %p183 = por %p181, %p182
      %p184 = scmp.ne.s32.totalorder %s173, %s174
      %p185 = scmp.eq.s32.totalorder %s28, 0
      %p186 = por %p184, %p185
      %p187 = scmp.ne.s32.totalorder %s173, %s174
      %p188 = scmp.eq.s32.totalorder %s29, 3
      %p189 = por %p187, %p188
      %p191 = scmp.ne.s32.totalorder %s174, %s190
      %p192 = scmp.eq.s32.totalorder %s29, 0
      %p193 = por %p191, %p192
      %p194 = scmp.le.s32.totalorder 1, %s23
      %p195 = scmp.lt.s32.totalorder %s23, 5
      %p196 = pnand %p194, %p195
      %p197 = pneg %p196
      // Predicated region
      $region9: #{tpu_custom_call.1} parent=5 // pred_check
        _
      $region10: #{tpu_custom_call.1} parent=5 // pred_check_branch
        %199 = sbr.rel (%p196) target = $region12
      $region11: #{tpu_custom_call.1} parent=5 // pred_region
        %s200 = ssub.s32 %s23, 1
        // Predicated region
        $region13: #{tpu_custom_call.1} parent=11 // pred_check
          %p201 = pneg %p160
        $region14: #{tpu_custom_call.1} parent=11 // pred_check_branch
          %203 = sbr.rel (%p201) target = $region16
        $region15: #{tpu_custom_call.1} parent=11 // pred_region
          _
        $region16: #{tpu_custom_call.1} parent=11 // pred_fallthru
          _
      $region12: #{tpu_custom_call.1} parent=5 // pred_fallthru
        _
      %p204 = scmp.lt.s32.totalorder %s23, 4
      // Predicated region
      $region17: #{tpu_custom_call.1} parent=5 // pred_check
        %p205 = pneg %p204
      $region18: #{tpu_custom_call.1} parent=5 // pred_check_branch
        %207 = sbr.rel (%p205) target = $region20
      $region19: #{tpu_custom_call.1} parent=5 // pred_region
        // Predicated region
        $region21: #{tpu_custom_call.1} parent=19 // pred_check
          %p208 = pneg %p55
        $region22: #{tpu_custom_call.1} parent=19 // pred_check_branch
          %210 = sbr.rel (%p208) target = $region24
        $region23: #{tpu_custom_call.1} parent=19 // pred_region
          %s211 = sand.u32 %s45, 1
          %s212 = scalar_lea.sflag [#allocation4], %s211
          %s213 = sand.u32 %s45, 1
          %s214 = smul.addr %s213, 16
          %s215 = scalar_lea.vmem [#allocation3], %s214
          %s216 = smul.u32 2, %s30
          %s218 = ssub.s32 256, 256
          %219 = vsyncadd %s212, %s218
          %s220 = smul.addr %s216, 128
          %s221 = scalar_lea.hbm %s0, %s220
          %s222 = sshll.u32 %s215, 4
          %s223 = int_to_ptr.vmem [resolvable:$true] %s222
          %228 = dma.hbm_to_vmem [thread:$0]  %s221, 256, %s223, %s212, 128, 128, 8
        $region24: #{tpu_custom_call.1} parent=19 // pred_fallthru
          _
        // Predicated region
        $region25: #{tpu_custom_call.1} parent=19 // pred_check
          %p229 = pneg %p81
        $region26: #{tpu_custom_call.1} parent=19 // pred_check_branch
          %231 = sbr.rel (%p229) target = $region28
        $region27: #{tpu_custom_call.1} parent=19 // pred_region
          %s232 = sand.u32 %s23, 1
          %s233 = scalar_lea.sflag [#allocation7], %s232
          %s234 = sand.u32 %s71, 1
          %s235 = smul.addr %s234, 256
          %s236 = scalar_lea.vmem [#allocation6], %s235
          %s237 = smul.u32 2, %s31
          %s239 = ssub.s32 4096, 4096
          %240 = vsyncadd %s233, %s239
          %s241 = smul.addr %s237, 128
          %s242 = scalar_lea.hbm %s1, %s241
          %s243 = sshll.u32 %s236, 4
          %s244 = int_to_ptr.vmem [resolvable:$true] %s243
          %249 = dma.hbm_to_vmem [thread:$0]  %s242, 4096, %s244, %s233, 512, 256, 16
        $region28: #{tpu_custom_call.1} parent=19 // pred_fallthru
          _
        // Predicated region
        $region29: #{tpu_custom_call.1} parent=19 // pred_check
          %p250 = pneg %p107
        $region30: #{tpu_custom_call.1} parent=19 // pred_check_branch
          %252 = sbr.rel (%p250) target = $region32
        $region31: #{tpu_custom_call.1} parent=19 // pred_region
          %s253 = sand.u32 %s23, 1
          %s254 = scalar_lea.sflag [#allocation7], %s253
          %s255 = sand.u32 %s97, 1
          %s256 = smul.addr %s255, 2
          %s257 = scalar_lea.vmem [#allocation8], %s256
          %s258 = smul.u32 2, %s31
          %s260 = ssub.s32 32, 32
          %261 = vsyncadd %s254, %s260
          %s262 = smul.addr %s258, 16
          %s263 = scalar_lea.hbm %s2, %s262
          %s265 = sshll.u32 %s257, 4
          %s266 = int_to_ptr.vmem [resolvable:$true] %s265
          %268 = dma.hbm_to_vmem [thread:$0]  %s263, 32, %s266, %s254
        $region32: #{tpu_custom_call.1} parent=19 // pred_fallthru
          _
        // Predicated region
        $region33: #{tpu_custom_call.1} parent=19 // pred_check
          %p269 = pneg %p133
        $region34: #{tpu_custom_call.1} parent=19 // pred_check_branch
          %271 = sbr.rel (%p269) target = $region36
        $region35: #{tpu_custom_call.1} parent=19 // pred_region
          %s272 = sand.u32 %s123, 1
          %s273 = scalar_lea.sflag [#allocation10], %s272
          %s274 = sand.u32 %s123, 1
          %s275 = smul.addr %s274, 256
          %s276 = scalar_lea.vmem [#allocation9], %s275
          %s277 = smul.u32 32, %s31
          %s279 = ssub.s32 4096, 4096
          %280 = vsyncadd %s273, %s279
          %s281 = smul.addr %s277, 128
          %s282 = scalar_lea.hbm %s3, %s281
          %s283 = sshll.u32 %s276, 4
          %s284 = int_to_ptr.vmem [resolvable:$true] %s283
          %289 = dma.hbm_to_vmem [thread:$0]  %s282, 4096, %s284, %s273, 128, 128, 8
        $region36: #{tpu_custom_call.1} parent=19 // pred_fallthru
          _
      $region20: #{tpu_custom_call.1} parent=5 // pred_fallthru
        _
      %p290 = scmp.le.s32.totalorder 1, %s23
      %p291 = scmp.lt.s32.totalorder %s23, 5
      %p292 = pnand %p290, %p291
      %p293 = pneg %p292
      // Predicated region
      $region37: #{tpu_custom_call.1} parent=5 // pred_check
        _
      $region38: #{tpu_custom_call.1} parent=5 // pred_check_branch
        %295 = sbr.rel (%p292) target = $region40
      $region39: #{tpu_custom_call.1} parent=5 // pred_region
        %s296 = ssub.s32 %s23, 1
        %s297 = sand.u32 %s48, 1
        %s298 = scalar_lea.sflag [#allocation4], %s297
        %s299 = sand.u32 %s48, 1
        %s300 = smul.addr %s299, 16
        %s301 = scalar_lea.vmem [#allocation3], %s300
        // Predicated region
        $region41: #{tpu_custom_call.1} parent=39 // pred_check
          %p302 = pneg %p61
        $region42: #{tpu_custom_call.1} parent=39 // pred_check_branch
          %304 = sbr.rel (%p302) target = $region44
        $region43: #{tpu_custom_call.1} parent=39 // pred_region
          %305 = dma.done %s298, 256
        $region44: #{tpu_custom_call.1} parent=39 // pred_fallthru
          _
        %s306 = sand.u32 %s28, 1
        %s307 = scalar_lea.sflag [#allocation7], %s306
        %s308 = sand.u32 %s74, 1
        %s309 = smul.addr %s308, 256
        %s310 = scalar_lea.vmem [#allocation6], %s309
        // Predicated region
        $region45: #{tpu_custom_call.1} parent=39 // pred_check
          %p311 = pneg %p87
        $region46: #{tpu_custom_call.1} parent=39 // pred_check_branch
          %313 = sbr.rel (%p311) target = $region48
        $region47: #{tpu_custom_call.1} parent=39 // pred_region
          %314 = dma.done %s307, 4096
        $region48: #{tpu_custom_call.1} parent=39 // pred_fallthru
          _
        %s315 = sand.u32 %s28, 1
        %s316 = scalar_lea.sflag [#allocation7], %s315
        %s317 = sand.u32 %s100, 1
        %s318 = smul.addr %s317, 2
        %s319 = scalar_lea.vmem [#allocation8], %s318
        // Predicated region
        $region49: #{tpu_custom_call.1} parent=39 // pred_check
          %p320 = pneg %p113
        $region50: #{tpu_custom_call.1} parent=39 // pred_check_branch
          %322 = sbr.rel (%p320) target = $region52
        $region51: #{tpu_custom_call.1} parent=39 // pred_region
          %323 = dma.done %s316, 32
        $region52: #{tpu_custom_call.1} parent=39 // pred_fallthru
          _
        %s324 = sand.u32 %s126, 1
        %s325 = scalar_lea.sflag [#allocation10], %s324
        %s326 = sand.u32 %s126, 1
        %s327 = smul.addr %s326, 256
        %s328 = scalar_lea.vmem [#allocation9], %s327
        // Predicated region
        $region53: #{tpu_custom_call.1} parent=39 // pred_check
          %p329 = pneg %p139
        $region54: #{tpu_custom_call.1} parent=39 // pred_check_branch
          %331 = sbr.rel (%p329) target = $region56
        $region55: #{tpu_custom_call.1} parent=39 // pred_region
          %332 = dma.done %s325, 4096
        $region56: #{tpu_custom_call.1} parent=39 // pred_fallthru
          _
        %s333 = sand.u32 %s48, 1
        %s334 = scalar_lea.sflag [#allocation4], %s333
        %s335 = sand.u32 %s48, 1
        %s336 = smul.addr %s335, 16
        %s337 = scalar_lea.vmem [#allocation3], %s336
        %p338 = pneg %p61
        %p339 = pneg %p58
        %s340 = sand.u32 %s28, 1
        %s341 = scalar_lea.sflag [#allocation7], %s340
        %s342 = sand.u32 %s74, 1
        %s343 = smul.addr %s342, 256
        %s344 = scalar_lea.vmem [#allocation6], %s343
        %p345 = pneg %p87
        %p346 = pneg %p84
        %s347 = sand.u32 %s28, 1
        %s348 = scalar_lea.sflag [#allocation7], %s347
        %s349 = sand.u32 %s100, 1
        %s350 = smul.addr %s349, 2
        %s351 = scalar_lea.vmem [#allocation8], %s350
        %p352 = pneg %p113
        %p353 = pneg %p110
        %s354 = sand.u32 %s126, 1
        %s355 = scalar_lea.sflag [#allocation10], %s354
        %s356 = sand.u32 %s126, 1
        %s357 = smul.addr %s356, 256
        %s358 = scalar_lea.vmem [#allocation9], %s357
        %p359 = pneg %p139
        %p360 = pneg %p136
        %p361 = pneg %p160
        %p362 = pneg %p157
        %p363 = pneg %p186
        %p364 = pneg %p183
        %s365 = sand.u32 %s173, 1
        %s366 = scalar_lea.sflag [#allocation5], %s365
        %s367 = sand.u32 %s173, 1
        %s368 = smul.addr %s367, 16
        %s369 = scalar_lea.vmem [#allocation11], %s368
        %s370 = smul.u32 2, %s32
        %s371 = smul.u32 2, %s33
        %s372 = smul.u32 2, %s33
        %s373 = smul.u32 32, %s33
        %s374 = smul.u32 2, %s32
        %p375 = scmp.eq.s32.totalorder %s33, 0
        // Predicated region
        $region57: #{tpu_custom_call.1} parent=39 // pred_check
          %p376 = pneg %p375
        $region58: #{tpu_custom_call.1} parent=39 // pred_check_branch
          %378 = sbr.rel (%p376) target = $region60
        $region59: #{tpu_custom_call.1} parent=39 // pred_region
          %v379 = vld [vmem:[%s4] sm:$0x1]
          %v381 = vlaneseq
          %v382 = vshrl.u32 %v381, 7
          %v383 = vsub.s32 0, %v382
          %v384 = vrot.slane %v379, %v383
          %386 = vst [vmem:[#allocation2] sm:$0xff] %v384
          %387 = vst [vmem:[#allocation2 + $0x8] sm:$0xff] %v384
        $region60: #{tpu_custom_call.1} parent=39 // pred_fallthru
          _
        %v388 = vld [vmem:[%s301] sm:$0xff]
        %v389 = vld [vmem:[%s301 + $0x8] sm:$0xff]
        %v390 = vld [vmem:[%s310] sm:$0xff]
        %v391 = vld [vmem:[%s310 + $0x10] sm:$0xff]
        %v392 = vld [vmem:[%s310 + $0x20] sm:$0xff]
        %v393 = vld [vmem:[%s310 + $0x30] sm:$0xff]
        %v394 = vld [vmem:[%s310 + $0x40] sm:$0xff]
        %v395 = vld [vmem:[%s310 + $0x50] sm:$0xff]
        %v396 = vld [vmem:[%s310 + $0x60] sm:$0xff]
        %v397 = vld [vmem:[%s310 + $0x70] sm:$0xff]
        %v398 = vld [vmem:[%s310 + $0x80] sm:$0xff]
        %v399 = vld [vmem:[%s310 + $0x90] sm:$0xff]
        %v400 = vld [vmem:[%s310 + $0xa0] sm:$0xff]
        %v401 = vld [vmem:[%s310 + $0xb0] sm:$0xff]
        %v402 = vld [vmem:[%s310 + $0xc0] sm:$0xff]
        %v403 = vld [vmem:[%s310 + $0xd0] sm:$0xff]
        %v404 = vld [vmem:[%s310 + $0xe0] sm:$0xff]
        %v405 = vld [vmem:[%s310 + $0xf0] sm:$0xff]
        %v406 = vld [vmem:[%s319] sm:$0x1]
        %v408 = vlaneseq
        %v409 = vshrl.u32 %v408, 7
        %v410 = vsub.s32 0, %v409
        %v411 = vrot.slane %v406, %v410
        %413 = vmatprep.subr.mxu0 0.0
        %414 = vmatpush1.msra.mxu0 %v405
        %415 = vmatprep.subr.mxu0 0.0
        %416 = vmatpush1.msra.mxu0 %v404
        %417 = vmatprep.subr.mxu0 0.0
        %418 = vmatpush1.msra.mxu0 %v403
        %419 = vmatprep.subr.mxu0 0.0
        %420 = vmatpush1.msra.mxu0 %v402
        %421 = vmatprep.subr.mxu0 0.0
        %422 = vmatpush1.msra.mxu0 %v401
        %423 = vmatprep.subr.mxu0 0.0
        %424 = vmatpush1.msra.mxu0 %v400
        %425 = vmatprep.subr.mxu0 0.0
        %426 = vmatpush1.msra.mxu0 %v399
        %427 = vmatprep.subr.mxu0 0.0
        %428 = vmatpush1.msra.mxu0 %v398
        %429 = vmatprep.subr.mxu0 0.0
        %430 = vmatpush1.msra.mxu0 %v397
        %431 = vmatprep.subr.mxu0 0.0
        %432 = vmatpush1.msra.mxu0 %v396
        %433 = vmatprep.subr.mxu0 0.0
        %434 = vmatpush1.msra.mxu0 %v395
        %435 = vmatprep.subr.mxu0 0.0
        %436 = vmatpush1.msra.mxu0 %v394
        %437 = vmatprep.subr.mxu0 0.0
        %438 = vmatpush1.msra.mxu0 %v393
        %439 = vmatprep.subr.mxu0 0.0
        %440 = vmatpush1.msra.mxu0 %v392
        %441 = vmatprep.subr.mxu0 0.0
        %442 = vmatpush1.msra.mxu0 %v391
        %443 = vmatprep.subr.mxu0 0.0
        %444 = vmatpush1.msra.mxu0 %v390
        %445 = vmatprep.subr.mxu0 0.0
        %446 = vmatpush2.msra.mxu0 0.0
        %447 = vmatprep.subr.mxu0 0.0
        %448 = vmatpush2.msra.mxu0 0.0
        %449 = vmatprep.subr.mxu0 0.0
        %450 = vmatpush2.msra.mxu0 0.0
        %451 = vmatprep.subr.mxu0 0.0
        %452 = vmatpush2.msra.mxu0 0.0
        %453 = vmatprep.subr.mxu0 0.0
        %454 = vmatpush2.msra.mxu0 0.0
        %455 = vmatprep.subr.mxu0 0.0
        %456 = vmatpush2.msra.mxu0 0.0
        %457 = vmatprep.subr.mxu0 0.0
        %458 = vmatpush2.msra.mxu0 0.0
        %459 = vmatprep.subr.mxu0 0.0
        %460 = vmatpush2.msra.mxu0 0.0
        %461 = vmatprep.subr.mxu0 0.0
        %462 = vmatpush2.msra.mxu0 0.0
        %463 = vmatprep.subr.mxu0 0.0
        %464 = vmatpush2.msra.mxu0 0.0
        %465 = vmatprep.subr.mxu0 0.0
        %466 = vmatpush2.msra.mxu0 0.0
        %467 = vmatprep.subr.mxu0 0.0
        %468 = vmatpush2.msra.mxu0 0.0
        %469 = vmatprep.subr.mxu0 0.0
        %470 = vmatpush2.msra.mxu0 0.0
        %471 = vmatprep.subr.mxu0 0.0
        %472 = vmatpush2.msra.mxu0 0.0
        %473 = vmatprep.subr.mxu0 0.0
        %474 = vmatpush2.msra.mxu0 0.0
        %475 = vmatprep.subr.mxu0 0.0
        %476 = vmatpush2.msra.mxu0 0.0
        %477 = vmatprep.mubr.f32.mxu0 0.0
        %478 = vmatmul.mubr.f32.gmra.mxu0 %v388
        %v479 = vpop.f32.mrf.mxu0
        %v480 = vadd.f32 %v411, %v479
        %v481 = vpop.f32.mrf.mxu0
        %482 = vmatprep.mubr.f32.mxu0 0.0
        %483 = vmatmul.mubr.f32.gmra.mxu0 %v389
        %v484 = vpop.f32.mrf.mxu0
        %v485 = vadd.f32 %v411, %v484
        %v486 = vpop.f32.mrf.mxu0
        %487 = vdwg.mxu0
        %v488 = vmul.f32 %v480, 0.5
        %v489 = vmul.f32 %v485, 0.5
        %v490 = vmul.f32 %v480, 0.044715
        %v491 = vmul.f32 %v485, 0.044715
        %v492 = vmul.f32 %v490, %v480
        %v493 = vmul.f32 %v491, %v485
        %v494 = vmul.f32 %v492, %v480
        %v495 = vmul.f32 %v493, %v485
        %v496 = vadd.f32 %v480, %v494
        %v497 = vadd.f32 %v485, %v495
        %v498 = vmul.f32 %v496, 0.7978846
        %v499 = vmul.f32 %v497, 0.7978846
        %v500 = vtanh.pop %v498
        %v501 = vtanh.pop %v499
        %v502 = vadd.f32 %v500, 1.0
        %v503 = vadd.f32 %v501, 1.0
        %v504 = vmul.f32 %v488, %v502
        %v505 = vmul.f32 %v489, %v503
        %v506 = vld [vmem:[#allocation2] sm:$0xff]
        %v507 = vld [vmem:[#allocation2 + $0x8] sm:$0xff]
        %v508 = vld [vmem:[%s328] sm:$0xff]
        %v509 = vld [vmem:[%s328 + $0x8] sm:$0xff]
        %v510 = vld [vmem:[%s328 + $0x10] sm:$0xff]
        %v511 = vld [vmem:[%s328 + $0x18] sm:$0xff]
        %v512 = vld [vmem:[%s328 + $0x20] sm:$0xff]
        %v513 = vld [vmem:[%s328 + $0x28] sm:$0xff]
        %v514 = vld [vmem:[%s328 + $0x30] sm:$0xff]
        %v515 = vld [vmem:[%s328 + $0x38] sm:$0xff]
        %v516 = vld [vmem:[%s328 + $0x40] sm:$0xff]
        %v517 = vld [vmem:[%s328 + $0x48] sm:$0xff]
        %v518 = vld [vmem:[%s328 + $0x50] sm:$0xff]
        %v519 = vld [vmem:[%s328 + $0x58] sm:$0xff]
        %v520 = vld [vmem:[%s328 + $0x60] sm:$0xff]
        %v521 = vld [vmem:[%s328 + $0x68] sm:$0xff]
        %v522 = vld [vmem:[%s328 + $0x70] sm:$0xff]
        %v523 = vld [vmem:[%s328 + $0x78] sm:$0xff]
        %524 = vmatprep.subr.mxu0 0.0
        %525 = vmatpush1.msra.mxu0 %v523
        %526 = vmatprep.subr.mxu0 0.0
        %527 = vmatpush1.msra.mxu0 %v522
        %528 = vmatprep.subr.mxu0 0.0
        %529 = vmatpush1.msra.mxu0 %v521
        %530 = vmatprep.subr.mxu0 0.0
        %531 = vmatpush1.msra.mxu0 %v520
        %532 = vmatprep.subr.mxu0 0.0
        %533 = vmatpush1.msra.mxu0 %v519
        %534 = vmatprep.subr.mxu0 0.0
        %535 = vmatpush1.msra.mxu0 %v518
        %536 = vmatprep.subr.mxu0 0.0
        %537 = vmatpush1.msra.mxu0 %v517
        %538 = vmatprep.subr.mxu0 0.0
        %539 = vmatpush1.msra.mxu0 %v516
        %540 = vmatprep.subr.mxu0 0.0
        %541 = vmatpush1.msra.mxu0 %v515
        %542 = vmatprep.subr.mxu0 0.0
        %543 = vmatpush1.msra.mxu0 %v514
        %544 = vmatprep.subr.mxu0 0.0
        %545 = vmatpush1.msra.mxu0 %v513
        %546 = vmatprep.subr.mxu0 0.0
        %547 = vmatpush1.msra.mxu0 %v512
        %548 = vmatprep.subr.mxu0 0.0
        %549 = vmatpush1.msra.mxu0 %v511
        %550 = vmatprep.subr.mxu0 0.0
        %551 = vmatpush1.msra.mxu0 %v510
        %552 = vmatprep.subr.mxu0 0.0
        %553 = vmatpush1.msra.mxu0 %v509
        %554 = vmatprep.subr.mxu0 0.0
        %555 = vmatpush1.msra.mxu0 %v508
        %556 = vmatprep.subr.mxu0 0.0
        %557 = vmatpush2.msra.mxu0 0.0
        %558 = vmatprep.subr.mxu0 0.0
        %559 = vmatpush2.msra.mxu0 0.0
        %560 = vmatprep.subr.mxu0 0.0
        %561 = vmatpush2.msra.mxu0 0.0
        %562 = vmatprep.subr.mxu0 0.0
        %563 = vmatpush2.msra.mxu0 0.0
        %564 = vmatprep.subr.mxu0 0.0
        %565 = vmatpush2.msra.mxu0 0.0
        %566 = vmatprep.subr.mxu0 0.0
        %567 = vmatpush2.msra.mxu0 0.0
        %568 = vmatprep.subr.mxu0 0.0
        %569 = vmatpush2.msra.mxu0 0.0
        %570 = vmatprep.subr.mxu0 0.0
        %571 = vmatpush2.msra.mxu0 0.0
        %572 = vmatprep.subr.mxu0 0.0
        %573 = vmatpush2.msra.mxu0 0.0
        %574 = vmatprep.subr.mxu0 0.0
        %575 = vmatpush2.msra.mxu0 0.0
        %576 = vmatprep.subr.mxu0 0.0
        %577 = vmatpush2.msra.mxu0 0.0
        %578 = vmatprep.subr.mxu0 0.0
        %579 = vmatpush2.msra.mxu0 0.0
        %580 = vmatprep.subr.mxu0 0.0
        %581 = vmatpush2.msra.mxu0 0.0
        %582 = vmatprep.subr.mxu0 0.0
        %583 = vmatpush2.msra.mxu0 0.0
        %584 = vmatprep.subr.mxu0 0.0
        %585 = vmatpush2.msra.mxu0 0.0
        %586 = vmatprep.subr.mxu0 0.0
        %587 = vmatpush2.msra.mxu0 0.0
        %588 = vmatprep.mubr.f32.mxu0 0.0
        %589 = vmatmul.mubr.f32.gmra.mxu0 %v504
        %v590 = vpop.f32.mrf.mxu0
        %v591 = vadd.f32 0.0, %v590
        %v592 = vpop.f32.mrf.mxu0
        %593 = vmatprep.mubr.f32.mxu0 0.0
        %594 = vmatmul.mubr.f32.gmra.mxu0 %v505
        %v595 = vpop.f32.mrf.mxu0
        %v596 = vadd.f32 0.0, %v595
        %v597 = vpop.f32.mrf.mxu0
        %598 = vdwg.mxu0
        %v599 = vadd.f32 %v506, %v591
        %v600 = vadd.f32 %v507, %v596
        %601 = vst [vmem:[#allocation2] sm:$0xff] %v599
        %602 = vst [vmem:[#allocation2 + $0x8] sm:$0xff] %v600
        %s603 = scalar_lea.vmem %s310, 8 [#allocation6]
        %v604 = vld [vmem:[%s603] sm:$0xff]
        %v605 = vld [vmem:[%s603 + $0x10] sm:$0xff]
        %v606 = vld [vmem:[%s603 + $0x20] sm:$0xff]
        %v607 = vld [vmem:[%s603 + $0x30] sm:$0xff]
        %v608 = vld [vmem:[%s603 + $0x40] sm:$0xff]
        %v609 = vld [vmem:[%s603 + $0x50] sm:$0xff]
        %v610 = vld [vmem:[%s603 + $0x60] sm:$0xff]
        %v611 = vld [vmem:[%s603 + $0x70] sm:$0xff]
        %v612 = vld [vmem:[%s603 + $0x80] sm:$0xff]
        %v613 = vld [vmem:[%s603 + $0x90] sm:$0xff]
        %v614 = vld [vmem:[%s603 + $0xa0] sm:$0xff]
        %v615 = vld [vmem:[%s603 + $0xb0] sm:$0xff]
        %v616 = vld [vmem:[%s603 + $0xc0] sm:$0xff]
        %v617 = vld [vmem:[%s603 + $0xd0] sm:$0xff]
        %v618 = vld [vmem:[%s603 + $0xe0] sm:$0xff]
        %v619 = vld [vmem:[%s603 + $0xf0] sm:$0xff]
        %s620 = scalar_lea.vmem %s319, 1 [#allocation8]
        %v621 = vld [vmem:[%s620] sm:$0x1]
        %v623 = vlaneseq
        %v624 = vshrl.u32 %v623, 7
        %v625 = vsub.s32 0, %v624
        %v626 = vrot.slane %v621, %v625
        %628 = vmatprep.subr.mxu0 0.0
        %629 = vmatpush1.msra.mxu0 %v619
        %630 = vmatprep.subr.mxu0 0.0
        %631 = vmatpush1.msra.mxu0 %v618
        %632 = vmatprep.subr.mxu0 0.0
        %633 = vmatpush1.msra.mxu0 %v617
        %634 = vmatprep.subr.mxu0 0.0
        %635 = vmatpush1.msra.mxu0 %v616
        %636 = vmatprep.subr.mxu0 0.0
        %637 = vmatpush1.msra.mxu0 %v615
        %638 = vmatprep.subr.mxu0 0.0
        %639 = vmatpush1.msra.mxu0 %v614
        %640 = vmatprep.subr.mxu0 0.0
        %641 = vmatpush1.msra.mxu0 %v613
        %642 = vmatprep.subr.mxu0 0.0
        %643 = vmatpush1.msra.mxu0 %v612
        %644 = vmatprep.subr.mxu0 0.0
        %645 = vmatpush1.msra.mxu0 %v611
        %646 = vmatprep.subr.mxu0 0.0
        %647 = vmatpush1.msra.mxu0 %v610
        %648 = vmatprep.subr.mxu0 0.0
        %649 = vmatpush1.msra.mxu0 %v609
        %650 = vmatprep.subr.mxu0 0.0
        %651 = vmatpush1.msra.mxu0 %v608
        %652 = vmatprep.subr.mxu0 0.0
        %653 = vmatpush1.msra.mxu0 %v607
        %654 = vmatprep.subr.mxu0 0.0
        %655 = vmatpush1.msra.mxu0 %v606
        %656 = vmatprep.subr.mxu0 0.0
        %657 = vmatpush1.msra.mxu0 %v605
        %658 = vmatprep.subr.mxu0 0.0
        %659 = vmatpush1.msra.mxu0 %v604
        %660 = vmatprep.subr.mxu0 0.0
        %661 = vmatpush2.msra.mxu0 0.0
        %662 = vmatprep.subr.mxu0 0.0
        %663 = vmatpush2.msra.mxu0 0.0
        %664 = vmatprep.subr.mxu0 0.0
        %665 = vmatpush2.msra.mxu0 0.0
        %666 = vmatprep.subr.mxu0 0.0
        %667 = vmatpush2.msra.mxu0 0.0
        %668 = vmatprep.subr.mxu0 0.0
        %669 = vmatpush2.msra.mxu0 0.0
        %670 = vmatprep.subr.mxu0 0.0
        %671 = vmatpush2.msra.mxu0 0.0
        %672 = vmatprep.subr.mxu0 0.0
        %673 = vmatpush2.msra.mxu0 0.0
        %674 = vmatprep.subr.mxu0 0.0
        %675 = vmatpush2.msra.mxu0 0.0
        %676 = vmatprep.subr.mxu0 0.0
        %677 = vmatpush2.msra.mxu0 0.0
        %678 = vmatprep.subr.mxu0 0.0
        %679 = vmatpush2.msra.mxu0 0.0
        %680 = vmatprep.subr.mxu0 0.0
        %681 = vmatpush2.msra.mxu0 0.0
        %682 = vmatprep.subr.mxu0 0.0
        %683 = vmatpush2.msra.mxu0 0.0
        %684 = vmatprep.subr.mxu0 0.0
        %685 = vmatpush2.msra.mxu0 0.0
        %686 = vmatprep.subr.mxu0 0.0
        %687 = vmatpush2.msra.mxu0 0.0
        %688 = vmatprep.subr.mxu0 0.0
        %689 = vmatpush2.msra.mxu0 0.0
        %690 = vmatprep.subr.mxu0 0.0
        %691 = vmatpush2.msra.mxu0 0.0
        %692 = vmatprep.mubr.f32.mxu0 0.0
        %693 = vmatmul.mubr.f32.gmra.mxu0 %v388
        %v694 = vpop.f32.mrf.mxu0
        %v695 = vadd.f32 %v626, %v694
        %v696 = vpop.f32.mrf.mxu0
        %697 = vmatprep.mubr.f32.mxu0 0.0
        %698 = vmatmul.mubr.f32.gmra.mxu0 %v389
        %v699 = vpop.f32.mrf.mxu0
        %v700 = vadd.f32 %v626, %v699
        %v701 = vpop.f32.mrf.mxu0
        %702 = vdwg.mxu0
        %v703 = vmul.f32 %v695, 0.5
        %v704 = vmul.f32 %v700, 0.5
        %v705 = vmul.f32 %v695, 0.044715
        %v706 = vmul.f32 %v700, 0.044715
        %v707 = vmul.f32 %v705, %v695
        %v708 = vmul.f32 %v706, %v700
        %v709 = vmul.f32 %v707, %v695
        %v710 = vmul.f32 %v708, %v700
        %v711 = vadd.f32 %v695, %v709
        %v712 = vadd.f32 %v700, %v710
        %v713 = vmul.f32 %v711, 0.7978846
        %v714 = vmul.f32 %v712, 0.7978846
        %v715 = vtanh.pop %v713
        %v716 = vtanh.pop %v714
        %v717 = vadd.f32 %v715, 1.0
        %v718 = vadd.f32 %v716, 1.0
        %v719 = vmul.f32 %v703, %v717
        %v720 = vmul.f32 %v704, %v718
        %v721 = vld [vmem:[#allocation2] sm:$0xff]
        %v722 = vld [vmem:[#allocation2 + $0x8] sm:$0xff]
        %s723 = scalar_lea.vmem %s328, 128 [#allocation9]
        %v724 = vld [vmem:[%s723] sm:$0xff]
        %v725 = vld [vmem:[%s723 + $0x8] sm:$0xff]
        %v726 = vld [vmem:[%s723 + $0x10] sm:$0xff]
        %v727 = vld [vmem:[%s723 + $0x18] sm:$0xff]
        %v728 = vld [vmem:[%s723 + $0x20] sm:$0xff]
        %v729 = vld [vmem:[%s723 + $0x28] sm:$0xff]
        %v730 = vld [vmem:[%s723 + $0x30] sm:$0xff]
        %v731 = vld [vmem:[%s723 + $0x38] sm:$0xff]
        %v732 = vld [vmem:[%s723 + $0x40] sm:$0xff]
        %v733 = vld [vmem:[%s723 + $0x48] sm:$0xff]
        %v734 = vld [vmem:[%s723 + $0x50] sm:$0xff]
        %v735 = vld [vmem:[%s723 + $0x58] sm:$0xff]
        %v736 = vld [vmem:[%s723 + $0x60] sm:$0xff]
        %v737 = vld [vmem:[%s723 + $0x68] sm:$0xff]
        %v738 = vld [vmem:[%s723 + $0x70] sm:$0xff]
        %v739 = vld [vmem:[%s723 + $0x78] sm:$0xff]
        %740 = vmatprep.subr.mxu0 0.0
        %741 = vmatpush1.msra.mxu0 %v739
        %742 = vmatprep.subr.mxu0 0.0
        %743 = vmatpush1.msra.mxu0 %v738
        %744 = vmatprep.subr.mxu0 0.0
        %745 = vmatpush1.msra.mxu0 %v737
        %746 = vmatprep.subr.mxu0 0.0
        %747 = vmatpush1.msra.mxu0 %v736
        %748 = vmatprep.subr.mxu0 0.0
        %749 = vmatpush1.msra.mxu0 %v735
        %750 = vmatprep.subr.mxu0 0.0
        %751 = vmatpush1.msra.mxu0 %v734
        %752 = vmatprep.subr.mxu0 0.0
        %753 = vmatpush1.msra.mxu0 %v733
        %754 = vmatprep.subr.mxu0 0.0
        %755 = vmatpush1.msra.mxu0 %v732
        %756 = vmatprep.subr.mxu0 0.0
        %757 = vmatpush1.msra.mxu0 %v731
        %758 = vmatprep.subr.mxu0 0.0
        %759 = vmatpush1.msra.mxu0 %v730
        %760 = vmatprep.subr.mxu0 0.0
        %761 = vmatpush1.msra.mxu0 %v729
        %762 = vmatprep.subr.mxu0 0.0
        %763 = vmatpush1.msra.mxu0 %v728
        %764 = vmatprep.subr.mxu0 0.0
        %765 = vmatpush1.msra.mxu0 %v727
        %766 = vmatprep.subr.mxu0 0.0
        %767 = vmatpush1.msra.mxu0 %v726
        %768 = vmatprep.subr.mxu0 0.0
        %769 = vmatpush1.msra.mxu0 %v725
        %770 = vmatprep.subr.mxu0 0.0
        %771 = vmatpush1.msra.mxu0 %v724
        %772 = vmatprep.subr.mxu0 0.0
        %773 = vmatpush2.msra.mxu0 0.0
        %774 = vmatprep.subr.mxu0 0.0
        %775 = vmatpush2.msra.mxu0 0.0
        %776 = vmatprep.subr.mxu0 0.0
        %777 = vmatpush2.msra.mxu0 0.0
        %778 = vmatprep.subr.mxu0 0.0
        %779 = vmatpush2.msra.mxu0 0.0
        %780 = vmatprep.subr.mxu0 0.0
        %781 = vmatpush2.msra.mxu0 0.0
        %782 = vmatprep.subr.mxu0 0.0
        %783 = vmatpush2.msra.mxu0 0.0
        %784 = vmatprep.subr.mxu0 0.0
        %785 = vmatpush2.msra.mxu0 0.0
        %786 = vmatprep.subr.mxu0 0.0
        %787 = vmatpush2.msra.mxu0 0.0
        %788 = vmatprep.subr.mxu0 0.0
        %789 = vmatpush2.msra.mxu0 0.0
        %790 = vmatprep.subr.mxu0 0.0
        %791 = vmatpush2.msra.mxu0 0.0
        %792 = vmatprep.subr.mxu0 0.0
        %793 = vmatpush2.msra.mxu0 0.0
        %794 = vmatprep.subr.mxu0 0.0
        %795 = vmatpush2.msra.mxu0 0.0
        %796 = vmatprep.subr.mxu0 0.0
        %797 = vmatpush2.msra.mxu0 0.0
        %798 = vmatprep.subr.mxu0 0.0
        %799 = vmatpush2.msra.mxu0 0.0
        %800 = vmatprep.subr.mxu0 0.0
        %801 = vmatpush2.msra.mxu0 0.0
        %802 = vmatprep.subr.mxu0 0.0
        %803 = vmatpush2.msra.mxu0 0.0
        %804 = vmatprep.mubr.f32.mxu0 0.0
        %805 = vmatmul.mubr.f32.gmra.mxu0 %v719
        %v806 = vpop.f32.mrf.mxu0
        %v807 = vadd.f32 0.0, %v806
        %v808 = vpop.f32.mrf.mxu0
        %809 = vmatprep.mubr.f32.mxu0 0.0
        %810 = vmatmul.mubr.f32.gmra.mxu0 %v720
        %v811 = vpop.f32.mrf.mxu0
        %v812 = vadd.f32 0.0, %v811
        %v813 = vpop.f32.mrf.mxu0
        %814 = vdwg.mxu0
        %v815 = vadd.f32 %v721, %v807
        %v816 = vadd.f32 %v722, %v812
        %817 = vst [vmem:[#allocation2] sm:$0xff] %v815
        %818 = vst [vmem:[#allocation2 + $0x8] sm:$0xff] %v816
        %p819 = scmp.eq.s32.totalorder %s33, 1
        // Predicated region
        $region61: #{tpu_custom_call.1} parent=39 // pred_check
          %p820 = pneg %p819
        $region62: #{tpu_custom_call.1} parent=39 // pred_check_branch
          %822 = sbr.rel (%p820) target = $region64
        $region63: #{tpu_custom_call.1} parent=39 // pred_region
          %v823 = vld [vmem:[#allocation2] sm:$0xff]
          %v824 = vld [vmem:[#allocation2 + $0x8] sm:$0xff]
          %825 = vst [vmem:[%s369] sm:$0xff] %v823
          %826 = vst [vmem:[%s369 + $0x8] sm:$0xff] %v824
        $region64: #{tpu_custom_call.1} parent=39 // pred_fallthru
          _
        %s827 = sand.u32 %s173, 1
        %s828 = scalar_lea.sflag [#allocation5], %s827
        %s829 = sand.u32 %s173, 1
        %s830 = smul.addr %s829, 16
        %s831 = scalar_lea.vmem [#allocation11], %s830
        // Predicated region
        $region65: #{tpu_custom_call.1} parent=39 // pred_check
          %p832 = pneg %p183
        $region66: #{tpu_custom_call.1} parent=39 // pred_check_branch
          %834 = sbr.rel (%p832) target = $region68
        $region67: #{tpu_custom_call.1} parent=39 // pred_region
          %s835 = smul.u32 2, %s32
          %s837 = ssub.s32 256, 256
          %838 = vsyncadd %s828, %s837
          %s839 = smul.addr %s835, 128
          %s840 = scalar_lea.hbm %s5, %s839
          %s841 = sshll.u32 %s831, 4
          %s842 = int_to_ptr.vmem [resolvable:$true] %s841
          %847 = dma.vmem_to_hbm [thread:$0]  %s842, 256, %s840, %s828, 128, 128, 8
        $region68: #{tpu_custom_call.1} parent=39 // pred_fallthru
          _
      $region40: #{tpu_custom_call.1} parent=5 // pred_fallthru
        _
      %p848 = scmp.le.s32.totalorder 2, %s23
      // Predicated region
      $region69: #{tpu_custom_call.1} parent=5 // pred_check
        %p849 = pneg %p848
      $region70: #{tpu_custom_call.1} parent=5 // pred_check_branch
        %851 = sbr.rel (%p849) target = $region72
      $region71: #{tpu_custom_call.1} parent=5 // pred_region
        %s852 = ssub.s32 %s23, 2
        // Predicated region
        $region73: #{tpu_custom_call.1} parent=71 // pred_check
          %p853 = pneg %p189
        $region74: #{tpu_custom_call.1} parent=71 // pred_check_branch
          %855 = sbr.rel (%p853) target = $region76
        $region75: #{tpu_custom_call.1} parent=71 // pred_region
          %s856 = sand.u32 %s174, 1
          %s857 = scalar_lea.sflag [#allocation5], %s856
          %s858 = sand.u32 %s174, 1
          %s859 = smul.addr %s858, 16
          %s860 = scalar_lea.vmem [#allocation11], %s859
          %861 = dma.done %s857, 256
        $region76: #{tpu_custom_call.1} parent=71 // pred_fallthru
          _
      $region72: #{tpu_custom_call.1} parent=5 // pred_fallthru
        _
    $region6: #{tpu_custom_call.1} parent=1 // loop_footer
      %s27 = sadd.s32 1, %s23
    $region7: #{tpu_custom_call.1} parent=1 // loop_footer_branch
      %22 = sbr.rel target = $region3
    $region8: #{tpu_custom_call.1} parent=1 // loop_exit
      _
    %862 = vsyncpa [#allocation4], 1
    %s863 = scalar_lea.sflag [#allocation4], 1
    %864 = vsyncpa %s863, 1
    %865 = vsyncpa [#allocation7], 1
    %s866 = scalar_lea.sflag [#allocation7], 1
    %867 = vsyncpa %s866, 1
    %868 = vsyncpa [#allocation10], 1
    %s869 = scalar_lea.sflag [#allocation10], 1
    %870 = vsyncpa %s869, 1
    %871 = vsyncpa [#allocation5], 1
    %s872 = scalar_lea.sflag [#allocation5], 1
    %873 = vsyncpa %s872, 1

</llo_original>
